<compile_context>
chip_gen: v6e
topology: v6e:2x2x1
jax: 0.10.0
libtpu: 0.0.40
codegen_flags: <defaults>
</compile_context>

<pallas_src>
import jax
import jax.numpy as jnp
from jax.experimental import pallas as pl
from jax.experimental.pallas import tpu as pltpu

IN_FEATURES = 9
IN_PAD = 16       # feature dim zero-padded 9 -> 16 (sublane-aligned contraction)
HIDDEN = 64
OUT_FEATURES = 7
W3_PAD = 128      # w3 columns zero-padded 7 -> 128 so the last MXU dot is lane-aligned


def _round_up(n, m):
    return ((n + m - 1) // m) * m


def basenet_kernel(x_ref, w1_ref, b1_ref, w2_ref, b2_ref, w3_ref, b3_ref, o_ref):
    # x_ref: [TB, 16] f32 (cols 9..15 are zero)
    x = x_ref[...]
    h1 = jnp.dot(x, w1_ref[...], preferred_element_type=jnp.float32) + b1_ref[...]
    h1 = jnp.maximum(h1, 0.0)                                           # [TB, 64]
    h2 = jnp.dot(h1, w2_ref[...], preferred_element_type=jnp.float32) + b2_ref[...]
    h2 = jnp.maximum(h2, 0.0)                                           # [TB, 64]
    # Lane-aligned MXU matmul (N=128), then slice the 7 real output columns.
    y3 = jnp.dot(h2, w3_ref[...], preferred_element_type=jnp.float32)   # [TB, 128]
    o_ref[...] = y3[:, :OUT_FEATURES] + b3_ref[...]                     # [TB, 7]


def basenet_forward(x, params, *, tb=1024):
    """x: [B, 9] f32.  params: (w1[9,64], b1[1,64], w2[64,64], b2[1,64], w3[64,7], b3[1,7])."""
    w1, b1, w2, b2, w3, b3 = params
    B = x.shape[0]

    # Tile size: multiple of 8 (f32 sublane), capped at `tb`.
    TB = min(tb, _round_up(B, 8))
    B_pad = _round_up(B, TB)
    grid = (B_pad // TB,)

    # Cheap wrapper-side padding: rows to a TB multiple, features 9 -> 16.
    x_p = jnp.pad(x.astype(jnp.float32),
                  ((0, B_pad - B), (0, IN_PAD - IN_FEATURES)))                      # [B_pad, 16]
    w1_p = jnp.pad(w1.astype(jnp.float32), ((0, IN_PAD - IN_FEATURES), (0, 0)))     # [16, 64]
    w2_p = w2.astype(jnp.float32)                                                   # [64, 64]
    w3_p = jnp.pad(w3.astype(jnp.float32), ((0, 0), (0, W3_PAD - OUT_FEATURES)))    # [64, 128]
    b1_p = b1.astype(jnp.float32)                                                   # [1, 64]
    b2_p = b2.astype(jnp.float32)                                                   # [1, 64]
    b3_p = b3.astype(jnp.float32)                                                   # [1, 7]

    const = lambda i: (0, 0)  # weights/biases stay VMEM-resident across the grid

    out_padded = pl.pallas_call(
        basenet_kernel,
        out_shape=jax.ShapeDtypeStruct((B_pad, OUT_FEATURES), jnp.float32),
        grid=grid,
        in_specs=[
            pl.BlockSpec((TB, IN_PAD), lambda i: (i, 0)),   # x tile (double-buffered)
            pl.BlockSpec((IN_PAD, HIDDEN), const),          # w1
            pl.BlockSpec((1, HIDDEN), const),               # b1
            pl.BlockSpec((HIDDEN, HIDDEN), const),          # w2
            pl.BlockSpec((1, HIDDEN), const),               # b2
            pl.BlockSpec((HIDDEN, W3_PAD), const),          # w3 (column-padded)
            pl.BlockSpec((1, OUT_FEATURES), const),         # b3
        ],
        out_specs=pl.BlockSpec((TB, OUT_FEATURES), lambda i: (i, 0)),
        compiler_params=pltpu.CompilerParams(
            dimension_semantics=("parallel",),
        ),
    )(x_p, w1_p, b1_p, w2_p, b2_p, w3_p, b3_p)

    return out_padded[:B]


def init_params(key):
    """Deterministic init mimicking nn.Linear's U(-1/sqrt(in), 1/sqrt(in))."""
    def linear(key, fan_in, fan_out):
        kw, kb = jax.random.split(key)
        bound = 1.0 / jnp.sqrt(jnp.float32(fan_in))
        w = jax.random.uniform(kw, (fan_in, fan_out), jnp.float32, -bound, bound)
        b = jax.random.uniform(kb, (1, fan_out), jnp.float32, -bound, bound)
        return w, b

    k1, k2, k3 = jax.random.split(key, 3)
    w1, b1 = linear(k1, IN_FEATURES, HIDDEN)
    w2, b2 = linear(k2, HIDDEN, HIDDEN)
    w3, b3 = linear(k3, HIDDEN, OUT_FEATURES)
    return (w1, b1, w2, b2, w3, b3)


def basenet_ref(x, params):
    """Pure-JAX f32 reference (matches the PyTorch forward)."""
    w1, b1, w2, b2, w3, b3 = params
    h1 = jnp.maximum(x @ w1 + b1, 0.0)
    h2 = jnp.maximum(h1 @ w2 + b2, 0.0)
    return h2 @ w3 + b3


if __name__ == "__main__":
    key = jax.random.PRNGKey(0)
    kx, kp = jax.random.split(key)

    # Small but non-trivial: B=40 with tb=16 -> B_pad=48, grid=(3,), exercises
    # multi-step pipelining, resident weights, and the padded tail tile.
    B = 40
    x = jax.random.normal(kx, (B, IN_FEATURES), jnp.float32)
    params = init_params(kp)

    out = basenet_forward(x, params, tb=16)
    out = jax.block_until_ready(out)

    ref = basenet_ref(x, params)
    assert out.shape == (B, OUT_FEATURES), out.shape
    # f32 storage; MXU default-precision passes -> modest tolerance vs f32 ref.
    assert jnp.allclose(out, ref, atol=2e-2, rtol=2e-2), "mismatch vs reference"

    print("KERNEL_OK")
</pallas_src>

<mosaic_0001>
module attributes {stable_mosaic.version = 11 : i64} {
  func.func @basenet_kernel(%arg0: i32, %arg1: memref<16x16xf32, #tpu.memory_space<vmem>>, %arg2: memref<16x64xf32, #tpu.memory_space<vmem>>, %arg3: memref<1x64xf32, #tpu.memory_space<vmem>>, %arg4: memref<64x64xf32, #tpu.memory_space<vmem>>, %arg5: memref<1x64xf32, #tpu.memory_space<vmem>>, %arg6: memref<64x128xf32, #tpu.memory_space<vmem>>, %arg7: memref<1x7xf32, #tpu.memory_space<vmem>>, %arg8: memref<16x7xf32, #tpu.memory_space<vmem>>) attributes {dimension_semantics = [#tpu.dimension_semantics<parallel>], iteration_bounds = array<i64: 3>, scalar_prefetch = 0 : i64, scratch_operands = 0 : i64, tpu.core_type = #tpu.core_type<tc>, window_params = [{transform_indices = @transform_0, window_bounds = array<i64: 16, 16>}, {pipeline_mode = #tpu.pipeline_mode<synchronous>, transform_indices = @transform_1, window_bounds = array<i64: 16, 64>}, {pipeline_mode = #tpu.pipeline_mode<synchronous>, transform_indices = @transform_2, window_bounds = array<i64: 1, 64>}, {pipeline_mode = #tpu.pipeline_mode<synchronous>, transform_indices = @transform_3, window_bounds = array<i64: 64, 64>}, {pipeline_mode = #tpu.pipeline_mode<synchronous>, transform_indices = @transform_4, window_bounds = array<i64: 1, 64>}, {pipeline_mode = #tpu.pipeline_mode<synchronous>, transform_indices = @transform_5, window_bounds = array<i64: 64, 128>}, {pipeline_mode = #tpu.pipeline_mode<synchronous>, transform_indices = @transform_6, window_bounds = array<i64: 1, 7>}, {transform_indices = @transform_7, window_bounds = array<i64: 16, 7>}]} {
    %c0 = arith.constant 0 : index
    %c0_0 = arith.constant 0 : index
    %0 = vector.load %arg1[%c0, %c0_0] : memref<16x16xf32, #tpu.memory_space<vmem>>, vector<16x16xf32>
    %c0_1 = arith.constant 0 : index
    %c0_2 = arith.constant 0 : index
    %1 = vector.load %arg2[%c0_1, %c0_2] : memref<16x64xf32, #tpu.memory_space<vmem>>, vector<16x64xf32>
    %cst = arith.constant dense<0.000000e+00> : vector<16x64xf32>
    %2 = tpu.matmul %0, %1, %cst {dimension_numbers = #tpu.dot_dimension_numbers<[1], [0], [0], [1], [0, 0, 1, 1], [], []>} : vector<16x16xf32>, vector<16x64xf32>, vector<16x64xf32> -> vector<16x64xf32>
    %c0_3 = arith.constant 0 : index
    %c0_4 = arith.constant 0 : index
    %3 = vector.load %arg3[%c0_3, %c0_4] : memref<1x64xf32, #tpu.memory_space<vmem>>, vector<1x64xf32>
    %4 = vector.broadcast %3 : vector<1x64xf32> to vector<16x64xf32>
    %5 = arith.addf %2, %4 : vector<16x64xf32>
    %cst_5 = arith.constant 0.000000e+00 : f32
    %6 = vector.broadcast %cst_5 : f32 to vector<16x64xf32>
    %7 = arith.maximumf %5, %6 : vector<16x64xf32>
    %c0_6 = arith.constant 0 : index
    %c0_7 = arith.constant 0 : index
    %8 = vector.load %arg4[%c0_6, %c0_7] : memref<64x64xf32, #tpu.memory_space<vmem>>, vector<64x64xf32>
    %cst_8 = arith.constant dense<0.000000e+00> : vector<16x64xf32>
    %9 = tpu.matmul %7, %8, %cst_8 {dimension_numbers = #tpu.dot_dimension_numbers<[1], [0], [0], [1], [0, 0, 1, 1], [], []>} : vector<16x64xf32>, vector<64x64xf32>, vector<16x64xf32> -> vector<16x64xf32>
    %c0_9 = arith.constant 0 : index
    %c0_10 = arith.constant 0 : index
    %10 = vector.load %arg5[%c0_9, %c0_10] : memref<1x64xf32, #tpu.memory_space<vmem>>, vector<1x64xf32>
    %11 = vector.broadcast %10 : vector<1x64xf32> to vector<16x64xf32>
    %12 = arith.addf %9, %11 : vector<16x64xf32>
    %cst_11 = arith.constant 0.000000e+00 : f32
    %13 = vector.broadcast %cst_11 : f32 to vector<16x64xf32>
    %14 = arith.maximumf %12, %13 : vector<16x64xf32>
    %c0_12 = arith.constant 0 : index
    %c0_13 = arith.constant 0 : index
    %15 = vector.load %arg6[%c0_12, %c0_13] : memref<64x128xf32, #tpu.memory_space<vmem>>, vector<64x128xf32>
    %cst_14 = arith.constant dense<0.000000e+00> : vector<16x128xf32>
    %16 = tpu.matmul %14, %15, %cst_14 {dimension_numbers = #tpu.dot_dimension_numbers<[1], [0], [0], [1], [0, 0, 1, 1], [], []>} : vector<16x64xf32>, vector<64x128xf32>, vector<16x128xf32> -> vector<16x128xf32>
    %17 = vector.extract_strided_slice %16 {offsets = [0, 0], sizes = [16, 7], strides = [1, 1]} : vector<16x128xf32> to vector<16x7xf32>
    %c0_15 = arith.constant 0 : index
    %c0_16 = arith.constant 0 : index
    %18 = vector.load %arg7[%c0_15, %c0_16] : memref<1x7xf32, #tpu.memory_space<vmem>>, vector<1x7xf32>
    %19 = vector.broadcast %18 : vector<1x7xf32> to vector<16x7xf32>
    %20 = arith.addf %17, %19 : vector<16x7xf32>
    %c0_17 = arith.constant 0 : index
    %c0_18 = arith.constant 0 : index
    %21 = vector.load %arg8[%c0_17, %c0_18] : memref<16x7xf32, #tpu.memory_space<vmem>>, vector<16x7xf32>
    tpu.vector_store %arg8[%c0_17, %c0_18], %20 {strides = array<i32>} : memref<16x7xf32, #tpu.memory_space<vmem>>, vector<16x7xf32>,
    return
  }
  func.func @transform_0(%arg0: i32) -> (i32, i32) {
    %c0_i32 = arith.constant 0 : i32
    %c0_i32_0 = arith.constant 0 : i32
    return %arg0, %c0_i32 : i32, i32
  }
  func.func @transform_1(%arg0: i32) -> (i32, i32) {
    %c0_i32 = arith.constant 0 : i32
    %c0_i32_0 = arith.constant 0 : i32
    %c0_i32_1 = arith.constant 0 : i32
    return %c0_i32, %c0_i32_0 : i32, i32
  }
  func.func @transform_2(%arg0: i32) -> (i32, i32) {
    %c0_i32 = arith.constant 0 : i32
    %c0_i32_0 = arith.constant 0 : i32
    %c0_i32_1 = arith.constant 0 : i32
    return %c0_i32, %c0_i32_0 : i32, i32
  }
  func.func @transform_3(%arg0: i32) -> (i32, i32) {
    %c0_i32 = arith.constant 0 : i32
    %c0_i32_0 = arith.constant 0 : i32
    %c0_i32_1 = arith.constant 0 : i32
    return %c0_i32, %c0_i32_0 : i32, i32
  }
  func.func @transform_4(%arg0: i32) -> (i32, i32) {
    %c0_i32 = arith.constant 0 : i32
    %c0_i32_0 = arith.constant 0 : i32
    %c0_i32_1 = arith.constant 0 : i32
    return %c0_i32, %c0_i32_0 : i32, i32
  }
  func.func @transform_5(%arg0: i32) -> (i32, i32) {
    %c0_i32 = arith.constant 0 : i32
    %c0_i32_0 = arith.constant 0 : i32
    %c0_i32_1 = arith.constant 0 : i32
    return %c0_i32, %c0_i32_0 : i32, i32
  }
  func.func @transform_6(%arg0: i32) -> (i32, i32) {
    %c0_i32 = arith.constant 0 : i32
    %c0_i32_0 = arith.constant 0 : i32
    %c0_i32_1 = arith.constant 0 : i32
    return %c0_i32, %c0_i32_0 : i32, i32
  }
  func.func @transform_7(%arg0: i32) -> (i32, i32) {
    %c0_i32 = arith.constant 0 : i32
    %c0_i32_0 = arith.constant 0 : i32
    return %arg0, %c0_i32 : i32, i32
  }
}

</mosaic_0001>

<llo_original>
// kernel: tpu_custom_call.1
$region0: #{tpu_custom_call.1}
  #allocation0 [shape = 'u32[]', space=smem, size = 0x4, offset = 0x4, fixed_abs, tag = 'smem constant byte address 0x4 - core index']
  #allocation1 [shape = 'u32[144,128]{1,0:T(1,128)}', space=vmem, size = 0x12000, scoped, tag = 'internal scratch']
  %s0 = inlined_call_operand.vmem [shape: f32[48,16], index: 0, kind: input, shape index: {}]
  %s1 = inlined_call_operand.hbm [shape: f32[16,64], index: 1, kind: input, shape index: {}]
  %s2 = inlined_call_operand.vmem [shape: f32[1,64], index: 2, kind: input, shape index: {}]
  %s3 = inlined_call_operand.vmem [shape: f32[64,64], index: 3, kind: input, shape index: {}]
  %s4 = inlined_call_operand.vmem [shape: f32[1,64], index: 4, kind: input, shape index: {}]
  %s5 = inlined_call_operand.hbm [shape: f32[64,128], index: 5, kind: input, shape index: {}]
  %s6 = inlined_call_operand.vmem [shape: f32[1,7], index: 6, kind: input, shape index: {}]
  %s7 = inlined_call_operand.vmem [shape: f32[48,7], index: 7, kind: output, shape index: {}]
  %s8 = sld [smem:[#allocation0]]
  $region69: #{tpu_custom_call.1} parent=0
    _
  %s10 = ssub.s32 1, %s8
  %s11 = scalar_select 0, %s10, %s8
  $region1: #{tpu_custom_call.1} parent=0
    #allocation2 [shape = 'u8[8192]{0}', space=vmem, size = 0x2000, scoped, tag = 'input window, operand 1, single buffered']
    #allocation3 [shape = 's32[2]{0}', space=sflag, size = 0x8, scoped, tag = 'scoped memory for tpu_custom_call.1']
    #allocation4 [shape = 'u8[32768]{0}', space=vmem, size = 0x8000, scoped, tag = 'input window, operand 5, single buffered']
    #allocation5 [shape = 's32[1]{0}', space=sflag, size = 0x4, scoped, tag = 'scoped memory for tpu_custom_call.1']
    %12 = vsyncpa [#allocation3], 0
    %13 = vsyncpa [#allocation5], 0
    loop: start=0, step=1, limit=5
    $region2: #{tpu_custom_call.1} parent=1 // loop_pre_header
      _
    $region3: #{tpu_custom_call.1} parent=1 // loop_header
      %s15 = sphi 0, %s19
      %p16 = scmp.ge.s32.totalorder %s15, 5
      %s25 = sphi 0, %s27
      %s28 = sphi 0, %s25
      %s29 = sphi 0, %s28
      %s45 = sphi 0, %s29
      %s49 = sphi 0, %s49
      %s51 = sphi 0, %s49
      %s52 = sphi 0, %s51
      %s66 = sphi 0, %s52
      %s70 = sphi 0, %s70
      %s72 = sphi 0, %s70
      %s73 = sphi 0, %s72
      %s87 = sphi 0, %s73
      %s91 = sphi 0, %s91
      %s93 = sphi 0, %s91
      %s94 = sphi 0, %s93
      %s108 = sphi 0, %s94
      %s112 = sphi 0, %s112
      %s114 = sphi 0, %s112
      %s115 = sphi 0, %s114
      %s129 = sphi 0, %s115
      %s133 = sphi 0, %s133
      %s135 = sphi 0, %s133
      %s136 = sphi 0, %s135
      %s150 = sphi 0, %s136
      %s154 = sphi 0, %s154
      %s156 = sphi 0, %s154
      %s157 = sphi 0, %s156
      %s171 = sphi 0, %s157
      %s177 = sphi 0, %s179
      %s180 = sphi 0, %s177
      %s181 = sphi 0, %s180
      %s197 = sphi 0, %s181
    $region4: #{tpu_custom_call.1} parent=1 // loop_header_branch
      %18 = sbr.rel (%p16) target = $region8
    $region5: #{tpu_custom_call.1} parent=1 // loop_body
      %s20 = ssub.s32 %s15, 1
      %s21 = ssub.s32 %s15, 2
      %s22 = sadd.s32 %s15, 1
      %s23 = ssub.s32 %s15, %s22
      %p24 = scmp.eq.s32.totalorder %s23, 0
      %s26 = sadd.s32 %s25, 1
      %s27 = scalar_select %p24, %s25, %s26
      %p30 = pneg %p24
      %p31 = scmp.eq.s32.totalorder %s15, 2
      %p32 = por %p30, %p31
      %p33 = scmp.ne.s32.totalorder %s25, %s28
      %p34 = scmp.eq.s32.totalorder %s15, 0
      %p35 = por %p33, %p34
      %p36 = scmp.ne.s32.totalorder %s25, %s28
      %p37 = scmp.eq.s32.totalorder %s20, 2
      %p38 = por %p36, %p37
      %p39 = scmp.ne.s32.totalorder %s28, %s29
      %p40 = scmp.eq.s32.totalorder %s20, 0
      %p41 = por %p39, %p40
      %p42 = scmp.ne.s32.totalorder %s28, %s29
      %p43 = scmp.eq.s32.totalorder %s21, 2
      %p44 = por %p42, %p43
      %p46 = scmp.ne.s32.totalorder %s29, %s45
      %p47 = scmp.eq.s32.totalorder %s21, 0
      %p48 = por %p46, %p47
      %s50 = sadd.s32 %s49, 1
      %p53 = scmp.eq.s32.totalorder %s15, 2
      %p54 = scmp.ne.s32.totalorder %s49, %s51
      %p55 = scmp.eq.s32.totalorder %s15, 0
      %p56 = por %p54, %p55
      %p57 = scmp.ne.s32.totalorder %s49, %s51
      %p58 = scmp.eq.s32.totalorder %s20, 2
      %p59 = por %p57, %p58
      %p60 = scmp.ne.s32.totalorder %s51, %s52
      %p61 = scmp.eq.s32.totalorder %s20, 0
      %p62 = por %p60, %p61
      %p63 = scmp.ne.s32.totalorder %s51, %s52
      %p64 = scmp.eq.s32.totalorder %s21, 2
      %p65 = por %p63, %p64
      %p67 = scmp.ne.s32.totalorder %s52, %s66
      %p68 = scmp.eq.s32.totalorder %s21, 0
      %p69 = por %p67, %p68
      %s71 = sadd.s32 %s70, 1
      %p74 = scmp.eq.s32.totalorder %s15, 2
      %p75 = scmp.ne.s32.totalorder %s70, %s72
      %p76 = scmp.eq.s32.totalorder %s15, 0
      %p77 = por %p75, %p76
      %p78 = scmp.ne.s32.totalorder %s70, %s72
      %p79 = scmp.eq.s32.totalorder %s20, 2
      %p80 = por %p78, %p79
      %p81 = scmp.ne.s32.totalorder %s72, %s73
      %p82 = scmp.eq.s32.totalorder %s20, 0
      %p83 = por %p81, %p82
      %p84 = scmp.ne.s32.totalorder %s72, %s73
      %p85 = scmp.eq.s32.totalorder %s21, 2
      %p86 = por %p84, %p85
      %p88 = scmp.ne.s32.totalorder %s73, %s87
      %p89 = scmp.eq.s32.totalorder %s21, 0
      %p90 = por %p88, %p89
      %s92 = sadd.s32 %s91, 1
      %p95 = scmp.eq.s32.totalorder %s15, 2
      %p96 = scmp.ne.s32.totalorder %s91, %s93
      %p97 = scmp.eq.s32.totalorder %s15, 0
      %p98 = por %p96, %p97
      %p99 = scmp.ne.s32.totalorder %s91, %s93
      %p100 = scmp.eq.s32.totalorder %s20, 2
      %p101 = por %p99, %p100
      %p102 = scmp.ne.s32.totalorder %s93, %s94
      %p103 = scmp.eq.s32.totalorder %s20, 0
      %p104 = por %p102, %p103
      %p105 = scmp.ne.s32.totalorder %s93, %s94
      %p106 = scmp.eq.s32.totalorder %s21, 2
      %p107 = por %p105, %p106
      %p109 = scmp.ne.s32.totalorder %s94, %s108
      %p110 = scmp.eq.s32.totalorder %s21, 0
      %p111 = por %p109, %p110
      %s113 = sadd.s32 %s112, 1
      %p116 = scmp.eq.s32.totalorder %s15, 2
      %p117 = scmp.ne.s32.totalorder %s112, %s114
      %p118 = scmp.eq.s32.totalorder %s15, 0
      %p119 = por %p117, %p118
      %p120 = scmp.ne.s32.totalorder %s112, %s114
      %p121 = scmp.eq.s32.totalorder %s20, 2
      %p122 = por %p120, %p121
      %p123 = scmp.ne.s32.totalorder %s114, %s115
      %p124 = scmp.eq.s32.totalorder %s20, 0
      %p125 = por %p123, %p124
      %p126 = scmp.ne.s32.totalorder %s114, %s115
      %p127 = scmp.eq.s32.totalorder %s21, 2
      %p128 = por %p126, %p127
      %p130 = scmp.ne.s32.totalorder %s115, %s129
      %p131 = scmp.eq.s32.totalorder %s21, 0
      %p132 = por %p130, %p131
      %s134 = sadd.s32 %s133, 1
      %p137 = scmp.eq.s32.totalorder %s15, 2
      %p138 = scmp.ne.s32.totalorder %s133, %s135
      %p139 = scmp.eq.s32.totalorder %s15, 0
      %p140 = por %p138, %p139
      %p141 = scmp.ne.s32.totalorder %s133, %s135
      %p142 = scmp.eq.s32.totalorder %s20, 2
      %p143 = por %p141, %p142
      %p144 = scmp.ne.s32.totalorder %s135, %s136
      %p145 = scmp.eq.s32.totalorder %s20, 0
      %p146 = por %p144, %p145
      %p147 = scmp.ne.s32.totalorder %s135, %s136
      %p148 = scmp.eq.s32.totalorder %s21, 2
      %p149 = por %p147, %p148
      %p151 = scmp.ne.s32.totalorder %s136, %s150
      %p152 = scmp.eq.s32.totalorder %s21, 0
      %p153 = por %p151, %p152
      %s155 = sadd.s32 %s154, 1
      %p158 = scmp.eq.s32.totalorder %s15, 2
      %p159 = scmp.ne.s32.totalorder %s154, %s156
      %p160 = scmp.eq.s32.totalorder %s15, 0
      %p161 = por %p159, %p160
      %p162 = scmp.ne.s32.totalorder %s154, %s156
      %p163 = scmp.eq.s32.totalorder %s20, 2
      %p164 = por %p162, %p163
      %p165 = scmp.ne.s32.totalorder %s156, %s157
      %p166 = scmp.eq.s32.totalorder %s20, 0
      %p167 = por %p165, %p166
      %p168 = scmp.ne.s32.totalorder %s156, %s157
      %p169 = scmp.eq.s32.totalorder %s21, 2
      %p170 = por %p168, %p169
      %p172 = scmp.ne.s32.totalorder %s157, %s171
      %p173 = scmp.eq.s32.totalorder %s21, 0
      %p174 = por %p172, %p173
      %s175 = ssub.s32 %s15, %s22
      %p176 = scmp.eq.s32.totalorder %s175, 0
      %s178 = sadd.s32 %s177, 1
      %s179 = scalar_select %p176, %s177, %s178
      %p182 = pneg %p176
      %p183 = scmp.eq.s32.totalorder %s15, 2
      %p184 = por %p182, %p183
      %p185 = scmp.ne.s32.totalorder %s177, %s180
      %p186 = scmp.eq.s32.totalorder %s15, 0
      %p187 = por %p185, %p186
      %p188 = scmp.ne.s32.totalorder %s177, %s180
      %p189 = scmp.eq.s32.totalorder %s20, 2
      %p190 = por %p188, %p189
      %p191 = scmp.ne.s32.totalorder %s180, %s181
      %p192 = scmp.eq.s32.totalorder %s20, 0
      %p193 = por %p191, %p192
      %p194 = scmp.ne.s32.totalorder %s180, %s181
      %p195 = scmp.eq.s32.totalorder %s21, 2
      %p196 = por %p194, %p195
      %p198 = scmp.ne.s32.totalorder %s181, %s197
      %p199 = scmp.eq.s32.totalorder %s21, 0
      %p200 = por %p198, %p199
      %p201 = scmp.le.s32.totalorder 1, %s15
      %p202 = scmp.lt.s32.totalorder %s15, 4
      %p203 = pnand %p201, %p202
      %p204 = pneg %p203
      // Predicated region
      $region9: #{tpu_custom_call.1} parent=5 // pred_check
        _
      $region10: #{tpu_custom_call.1} parent=5 // pred_check_branch
        %206 = sbr.rel (%p203) target = $region12
      $region11: #{tpu_custom_call.1} parent=5 // pred_region
        %s207 = ssub.s32 %s15, 1
        // Predicated region
        $region13: #{tpu_custom_call.1} parent=11 // pred_check
          %p208 = pneg %p62
        $region14: #{tpu_custom_call.1} parent=11 // pred_check_branch
          %210 = sbr.rel (%p208) target = $region16
        $region15: #{tpu_custom_call.1} parent=11 // pred_region
          %s212 = ssub.s32 256, 256
          %213 = vsyncadd [#allocation3], %s212
          %s214 = sshll.u32 [#allocation2], 4
          %s215 = int_to_ptr.vmem [resolvable:$true] %s214
          %220 = dma.hbm_to_vmem [thread:$0]  %s1, 256, %s215, [#allocation3], 128, 128, 8
        $region16: #{tpu_custom_call.1} parent=11 // pred_fallthru
          _
        // Predicated region
        $region17: #{tpu_custom_call.1} parent=11 // pred_check
          %p221 = pneg %p83
        $region18: #{tpu_custom_call.1} parent=11 // pred_check_branch
          %223 = sbr.rel (%p221) target = $region20
        $region19: #{tpu_custom_call.1} parent=11 // pred_region
          _
        $region20: #{tpu_custom_call.1} parent=11 // pred_fallthru
          _
        // Predicated region
        $region21: #{tpu_custom_call.1} parent=11 // pred_check
          %p224 = pneg %p104
        $region22: #{tpu_custom_call.1} parent=11 // pred_check_branch
          %226 = sbr.rel (%p224) target = $region24
        $region23: #{tpu_custom_call.1} parent=11 // pred_region
          _
        $region24: #{tpu_custom_call.1} parent=11 // pred_fallthru
          _
        // Predicated region
        $region25: #{tpu_custom_call.1} parent=11 // pred_check
          %p227 = pneg %p125
        $region26: #{tpu_custom_call.1} parent=11 // pred_check_branch
          %229 = sbr.rel (%p227) target = $region28
        $region27: #{tpu_custom_call.1} parent=11 // pred_region
          _
        $region28: #{tpu_custom_call.1} parent=11 // pred_fallthru
          _
        // Predicated region
        $region29: #{tpu_custom_call.1} parent=11 // pred_check
          %p230 = pneg %p146
        $region30: #{tpu_custom_call.1} parent=11 // pred_check_branch
          %232 = sbr.rel (%p230) target = $region32
        $region31: #{tpu_custom_call.1} parent=11 // pred_region
          %s234 = ssub.s32 1024, 1024
          %235 = vsyncadd [#allocation5], %s234
          %s236 = sshll.u32 [#allocation4], 4
          %s237 = int_to_ptr.vmem [resolvable:$true] %s236
          %242 = dma.hbm_to_vmem [thread:$0]  %s5, 1024, %s237, [#allocation5], 128, 128, 8
        $region32: #{tpu_custom_call.1} parent=11 // pred_fallthru
          _
        // Predicated region
        $region33: #{tpu_custom_call.1} parent=11 // pred_check
          %p243 = pneg %p167
        $region34: #{tpu_custom_call.1} parent=11 // pred_check_branch
          %245 = sbr.rel (%p243) target = $region36
        $region35: #{tpu_custom_call.1} parent=11 // pred_region
          _
        $region36: #{tpu_custom_call.1} parent=11 // pred_fallthru
          _
      $region12: #{tpu_custom_call.1} parent=5 // pred_fallthru
        _
      %p246 = scmp.lt.s32.totalorder %s15, 3
      // Predicated region
      $region37: #{tpu_custom_call.1} parent=5 // pred_check
        %p247 = pneg %p246
      $region38: #{tpu_custom_call.1} parent=5 // pred_check_branch
        %249 = sbr.rel (%p247) target = $region40
      $region39: #{tpu_custom_call.1} parent=5 // pred_region
        // Predicated region
        $region41: #{tpu_custom_call.1} parent=39 // pred_check
          %p250 = pneg %p35
        $region42: #{tpu_custom_call.1} parent=39 // pred_check_branch
          %252 = sbr.rel (%p250) target = $region44
        $region43: #{tpu_custom_call.1} parent=39 // pred_region
          %s253 = smul.u32 2, %s15
          %p254 = scmp.lt.s32.totalorder %s253, 5
          %s255 = scalar_select %p254, %s253, 5
          %s256 = smul.addr %s255, 8
          %s257 = scalar_lea.vmem %s0, %s256
          %s258 = smul.u32 2, %s15
        $region44: #{tpu_custom_call.1} parent=39 // pred_fallthru
          _
      $region40: #{tpu_custom_call.1} parent=5 // pred_fallthru
        _
      %p259 = scmp.le.s32.totalorder 1, %s15
      %p260 = scmp.lt.s32.totalorder %s15, 4
      %p261 = pnand %p259, %p260
      %p262 = pneg %p261
      // Predicated region
      $region45: #{tpu_custom_call.1} parent=5 // pred_check
        _
      $region46: #{tpu_custom_call.1} parent=5 // pred_check_branch
        %264 = sbr.rel (%p261) target = $region48
      $region47: #{tpu_custom_call.1} parent=5 // pred_region
        %s265 = ssub.s32 %s15, 1
        // Predicated region
        $region49: #{tpu_custom_call.1} parent=47 // pred_check
          %p266 = pneg %p62
        $region50: #{tpu_custom_call.1} parent=47 // pred_check_branch
          %268 = sbr.rel (%p266) target = $region52
        $region51: #{tpu_custom_call.1} parent=47 // pred_region
          %269 = dma.done [#allocation3], 256
        $region52: #{tpu_custom_call.1} parent=47 // pred_fallthru
          _
        // Predicated region
        $region53: #{tpu_custom_call.1} parent=47 // pred_check
          %p270 = pneg %p146
        $region54: #{tpu_custom_call.1} parent=47 // pred_check_branch
          %272 = sbr.rel (%p270) target = $region56
        $region55: #{tpu_custom_call.1} parent=47 // pred_region
          %273 = dma.done [#allocation5], 1024
        $region56: #{tpu_custom_call.1} parent=47 // pred_fallthru
          _
        %s274 = smul.u32 2, %s20
        %p275 = scmp.lt.s32.totalorder %s274, 5
        %s276 = scalar_select %p275, %s274, 5
        %s277 = smul.addr %s276, 8
        %s278 = scalar_lea.vmem %s0, %s277
        %p279 = pneg %p41
        %p280 = pneg %p38
        %p281 = pneg %p62
        %p282 = pneg %p59
        %p283 = pneg %p83
        %p284 = pneg %p80
        %p285 = pneg %p104
        %p286 = pneg %p101
        %p287 = pneg %p125
        %p288 = pneg %p122
        %p289 = pneg %p146
        %p290 = pneg %p143
        %p291 = pneg %p167
        %p292 = pneg %p164
        %p293 = pneg %p193
        %p294 = pneg %p190
        %s295 = smul.u32 2, %s20
        %p296 = scmp.lt.s32.totalorder %s295, 5
        %s297 = scalar_select %p296, %s295, 5
        %s298 = smul.addr %s297, 8
        %s299 = scalar_lea.vmem %s7, %s298
        %s300 = smul.u32 2, %s20
        %p301 = scmp.lt.s32.totalorder %s300, 5
        %s302 = scalar_select %p301, %s300, 5
        %s303 = smul.addr %s302, 8
        %s304 = scalar_lea.vmem %s0, %s303
        %s305 = smul.u32 2, %s20
        %s306 = smul.u32 2, %s20
        %p307 = scmp.lt.s32.totalorder %s306, 5
        %s308 = scalar_select %p307, %s306, 5
        %s309 = smul.addr %s308, 8
        %s310 = scalar_lea.vmem %s7, %s309
        %s311 = smul.u32 2, %s20
        %v312 = vld [vmem:[%s304] sm:$0xff]
        %v313 = vld [vmem:[%s304 + $0x8] sm:$0xff]
        %v314 = vld [vmem:[#allocation2] sm:$0xff]
        %v315 = vld [vmem:[#allocation2 + $0x8] sm:$0xff]
        %v316 = vld [vmem:[%s2] sm:$0x1]
        %v318 = vlaneseq
        %v319 = vshrl.u32 %v318, 7
        %v320 = vsub.s32 0, %v319
        %v321 = vrot.slane %v316, %v320
        %vm323 = vcmask 130048
        %v325 = vsel %vm323, %v312, 0
        %v328 = vsel %vm323, %v313, 0
        %330 = vmatprep.subr.mxu0 0.0
        %331 = vmatpush1.msra.mxu0 0.0
        %332 = vmatprep.subr.mxu0 0.0
        %333 = vmatpush1.msra.mxu0 0.0
        %334 = vmatprep.subr.mxu0 0.0
        %335 = vmatpush1.msra.mxu0 0.0
        %336 = vmatprep.subr.mxu0 0.0
        %337 = vmatpush1.msra.mxu0 0.0
        %338 = vmatprep.subr.mxu0 0.0
        %339 = vmatpush1.msra.mxu0 0.0
        %340 = vmatprep.subr.mxu0 0.0
        %341 = vmatpush1.msra.mxu0 0.0
        %342 = vmatprep.subr.mxu0 0.0
        %343 = vmatpush1.msra.mxu0 0.0
        %344 = vmatprep.subr.mxu0 0.0
        %345 = vmatpush1.msra.mxu0 0.0
        %346 = vmatprep.subr.mxu0 0.0
        %347 = vmatpush1.msra.mxu0 0.0
        %348 = vmatprep.subr.mxu0 0.0
        %349 = vmatpush1.msra.mxu0 0.0
        %350 = vmatprep.subr.mxu0 0.0
        %351 = vmatpush1.msra.mxu0 0.0
        %352 = vmatprep.subr.mxu0 0.0
        %353 = vmatpush1.msra.mxu0 0.0
        %354 = vmatprep.subr.mxu0 0.0
        %355 = vmatpush1.msra.mxu0 0.0
        %356 = vmatprep.subr.mxu0 0.0
        %357 = vmatpush1.msra.mxu0 0.0
        %358 = vmatprep.subr.mxu0 0.0
        %359 = vmatpush1.msra.mxu0 %v315
        %360 = vmatprep.subr.mxu0 0.0
        %361 = vmatpush1.msra.mxu0 %v314
        %362 = vmatprep.subr.mxu0 0.0
        %363 = vmatpush2.msra.mxu0 0.0
        %364 = vmatprep.subr.mxu0 0.0
        %365 = vmatpush2.msra.mxu0 0.0
        %366 = vmatprep.subr.mxu0 0.0
        %367 = vmatpush2.msra.mxu0 0.0
        %368 = vmatprep.subr.mxu0 0.0
        %369 = vmatpush2.msra.mxu0 0.0
        %370 = vmatprep.subr.mxu0 0.0
        %371 = vmatpush2.msra.mxu0 0.0
        %372 = vmatprep.subr.mxu0 0.0
        %373 = vmatpush2.msra.mxu0 0.0
        %374 = vmatprep.subr.mxu0 0.0
        %375 = vmatpush2.msra.mxu0 0.0
        %376 = vmatprep.subr.mxu0 0.0
        %377 = vmatpush2.msra.mxu0 0.0
        %378 = vmatprep.subr.mxu0 0.0
        %379 = vmatpush2.msra.mxu0 0.0
        %380 = vmatprep.subr.mxu0 0.0
        %381 = vmatpush2.msra.mxu0 0.0
        %382 = vmatprep.subr.mxu0 0.0
        %383 = vmatpush2.msra.mxu0 0.0
        %384 = vmatprep.subr.mxu0 0.0
        %385 = vmatpush2.msra.mxu0 0.0
        %386 = vmatprep.subr.mxu0 0.0
        %387 = vmatpush2.msra.mxu0 0.0
        %388 = vmatprep.subr.mxu0 0.0
        %389 = vmatpush2.msra.mxu0 0.0
        %390 = vmatprep.subr.mxu0 0.0
        %391 = vmatpush2.msra.mxu0 0.0
        %392 = vmatprep.subr.mxu0 0.0
        %393 = vmatpush2.msra.mxu0 0.0
        %394 = vmatprep.mubr.f32.mxu0 0.0
        %395 = vmatmul.mubr.f32.gmra.mxu0 %v325
        %v396 = vpop.f32.mrf.mxu0
        %v397 = vadd.f32 %v321, %v396
        %v398 = vpop.f32.mrf.mxu0
        %399 = vmatprep.mubr.f32.mxu0 0.0
        %400 = vmatmul.mubr.f32.gmra.mxu0 %v328
        %v401 = vpop.f32.mrf.mxu0
        %v402 = vadd.f32 %v321, %v401
        %v403 = vpop.f32.mrf.mxu0
        %404 = vdwg.mxu0
        %v405 = vmax.f32 %v397, 0.0
        %v406 = vmax.f32 %v402, 0.0
        %v407 = vld [vmem:[%s3] sm:$0xff]
        %v408 = vld [vmem:[%s3 + $0x8] sm:$0xff]
        %v409 = vld [vmem:[%s3 + $0x10] sm:$0xff]
        %v410 = vld [vmem:[%s3 + $0x18] sm:$0xff]
        %v411 = vld [vmem:[%s3 + $0x20] sm:$0xff]
        %v412 = vld [vmem:[%s3 + $0x28] sm:$0xff]
        %v413 = vld [vmem:[%s3 + $0x30] sm:$0xff]
        %v414 = vld [vmem:[%s3 + $0x38] sm:$0xff]
        %v415 = vld [vmem:[%s4] sm:$0x1]
        %v417 = vlaneseq
        %v418 = vshrl.u32 %v417, 7
        %v419 = vsub.s32 0, %v418
        %v420 = vrot.slane %v415, %v419
        %vm422 = vcmask 523264
        %v424 = vsel %vm422, %v405, 0
        %v427 = vsel %vm422, %v406, 0
        %429 = vmatprep.subr.mxu0 0.0
        %430 = vmatpush1.msra.mxu0 0.0
        %431 = vmatprep.subr.mxu0 0.0
        %432 = vmatpush1.msra.mxu0 0.0
        %433 = vmatprep.subr.mxu0 0.0
        %434 = vmatpush1.msra.mxu0 0.0
        %435 = vmatprep.subr.mxu0 0.0
        %436 = vmatpush1.msra.mxu0 0.0
        %437 = vmatprep.subr.mxu0 0.0
        %438 = vmatpush1.msra.mxu0 0.0
        %439 = vmatprep.subr.mxu0 0.0
        %440 = vmatpush1.msra.mxu0 0.0
        %441 = vmatprep.subr.mxu0 0.0
        %442 = vmatpush1.msra.mxu0 0.0
        %443 = vmatprep.subr.mxu0 0.0
        %444 = vmatpush1.msra.mxu0 0.0
        %445 = vmatprep.subr.mxu0 0.0
        %446 = vmatpush1.msra.mxu0 %v414
        %447 = vmatprep.subr.mxu0 0.0
        %448 = vmatpush1.msra.mxu0 %v413
        %449 = vmatprep.subr.mxu0 0.0
        %450 = vmatpush1.msra.mxu0 %v412
        %451 = vmatprep.subr.mxu0 0.0
        %452 = vmatpush1.msra.mxu0 %v411
        %453 = vmatprep.subr.mxu0 0.0
        %454 = vmatpush1.msra.mxu0 %v410
        %455 = vmatprep.subr.mxu0 0.0
        %456 = vmatpush1.msra.mxu0 %v409
        %457 = vmatprep.subr.mxu0 0.0
        %458 = vmatpush1.msra.mxu0 %v408
        %459 = vmatprep.subr.mxu0 0.0
        %460 = vmatpush1.msra.mxu0 %v407
        %461 = vmatprep.subr.mxu0 0.0
        %462 = vmatpush2.msra.mxu0 0.0
        %463 = vmatprep.subr.mxu0 0.0
        %464 = vmatpush2.msra.mxu0 0.0
        %465 = vmatprep.subr.mxu0 0.0
        %466 = vmatpush2.msra.mxu0 0.0
        %467 = vmatprep.subr.mxu0 0.0
        %468 = vmatpush2.msra.mxu0 0.0
        %469 = vmatprep.subr.mxu0 0.0
        %470 = vmatpush2.msra.mxu0 0.0
        %471 = vmatprep.subr.mxu0 0.0
        %472 = vmatpush2.msra.mxu0 0.0
        %473 = vmatprep.subr.mxu0 0.0
        %474 = vmatpush2.msra.mxu0 0.0
        %475 = vmatprep.subr.mxu0 0.0
        %476 = vmatpush2.msra.mxu0 0.0
        %477 = vmatprep.subr.mxu0 0.0
        %478 = vmatpush2.msra.mxu0 0.0
        %479 = vmatprep.subr.mxu0 0.0
        %480 = vmatpush2.msra.mxu0 0.0
        %481 = vmatprep.subr.mxu0 0.0
        %482 = vmatpush2.msra.mxu0 0.0
        %483 = vmatprep.subr.mxu0 0.0
        %484 = vmatpush2.msra.mxu0 0.0
        %485 = vmatprep.subr.mxu0 0.0
        %486 = vmatpush2.msra.mxu0 0.0
        %487 = vmatprep.subr.mxu0 0.0
        %488 = vmatpush2.msra.mxu0 0.0
        %489 = vmatprep.subr.mxu0 0.0
        %490 = vmatpush2.msra.mxu0 0.0
        %491 = vmatprep.subr.mxu0 0.0
        %492 = vmatpush2.msra.mxu0 0.0
        %493 = vmatprep.mubr.f32.mxu0 0.0
        %494 = vmatmul.mubr.f32.gmra.mxu0 %v424
        %v495 = vpop.f32.mrf.mxu0
        %v496 = vadd.f32 %v420, %v495
        %v497 = vpop.f32.mrf.mxu0
        %498 = vmatprep.mubr.f32.mxu0 0.0
        %499 = vmatmul.mubr.f32.gmra.mxu0 %v427
        %v500 = vpop.f32.mrf.mxu0
        %v501 = vadd.f32 %v420, %v500
        %v502 = vpop.f32.mrf.mxu0
        %503 = vdwg.mxu0
        %v504 = vmax.f32 %v496, 0.0
        %v505 = vmax.f32 %v501, 0.0
        %v506 = vld [vmem:[#allocation4] sm:$0xff]
        %v507 = vld [vmem:[#allocation4 + $0x8] sm:$0xff]
        %v508 = vld [vmem:[#allocation4 + $0x10] sm:$0xff]
        %v509 = vld [vmem:[#allocation4 + $0x18] sm:$0xff]
        %v510 = vld [vmem:[#allocation4 + $0x20] sm:$0xff]
        %v511 = vld [vmem:[#allocation4 + $0x28] sm:$0xff]
        %v512 = vld [vmem:[#allocation4 + $0x30] sm:$0xff]
        %v513 = vld [vmem:[#allocation4 + $0x38] sm:$0xff]
        %v515 = vsel %vm422, %v504, 0
        %v518 = vsel %vm422, %v505, 0
        %520 = vmatprep.subr.mxu0 0.0
        %521 = vmatpush1.msra.mxu0 0.0
        %522 = vmatprep.subr.mxu0 0.0
        %523 = vmatpush1.msra.mxu0 0.0
        %524 = vmatprep.subr.mxu0 0.0
        %525 = vmatpush1.msra.mxu0 0.0
        %526 = vmatprep.subr.mxu0 0.0
        %527 = vmatpush1.msra.mxu0 0.0
        %528 = vmatprep.subr.mxu0 0.0
        %529 = vmatpush1.msra.mxu0 0.0
        %530 = vmatprep.subr.mxu0 0.0
        %531 = vmatpush1.msra.mxu0 0.0
        %532 = vmatprep.subr.mxu0 0.0
        %533 = vmatpush1.msra.mxu0 0.0
        %534 = vmatprep.subr.mxu0 0.0
        %535 = vmatpush1.msra.mxu0 0.0
        %536 = vmatprep.subr.mxu0 0.0
        %537 = vmatpush1.msra.mxu0 %v513
        %538 = vmatprep.subr.mxu0 0.0
        %539 = vmatpush1.msra.mxu0 %v512
        %540 = vmatprep.subr.mxu0 0.0
        %541 = vmatpush1.msra.mxu0 %v511
        %542 = vmatprep.subr.mxu0 0.0
        %543 = vmatpush1.msra.mxu0 %v510
        %544 = vmatprep.subr.mxu0 0.0
        %545 = vmatpush1.msra.mxu0 %v509
        %546 = vmatprep.subr.mxu0 0.0
        %547 = vmatpush1.msra.mxu0 %v508
        %548 = vmatprep.subr.mxu0 0.0
        %549 = vmatpush1.msra.mxu0 %v507
        %550 = vmatprep.subr.mxu0 0.0
        %551 = vmatpush1.msra.mxu0 %v506
        %552 = vmatprep.subr.mxu0 0.0
        %553 = vmatpush2.msra.mxu0 0.0
        %554 = vmatprep.subr.mxu0 0.0
        %555 = vmatpush2.msra.mxu0 0.0
        %556 = vmatprep.subr.mxu0 0.0
        %557 = vmatpush2.msra.mxu0 0.0
        %558 = vmatprep.subr.mxu0 0.0
        %559 = vmatpush2.msra.mxu0 0.0
        %560 = vmatprep.subr.mxu0 0.0
        %561 = vmatpush2.msra.mxu0 0.0
        %562 = vmatprep.subr.mxu0 0.0
        %563 = vmatpush2.msra.mxu0 0.0
        %564 = vmatprep.subr.mxu0 0.0
        %565 = vmatpush2.msra.mxu0 0.0
        %566 = vmatprep.subr.mxu0 0.0
        %567 = vmatpush2.msra.mxu0 0.0
        %568 = vmatprep.subr.mxu0 0.0
        %569 = vmatpush2.msra.mxu0 0.0
        %570 = vmatprep.subr.mxu0 0.0
        %571 = vmatpush2.msra.mxu0 0.0
        %572 = vmatprep.subr.mxu0 0.0
        %573 = vmatpush2.msra.mxu0 0.0
        %574 = vmatprep.subr.mxu0 0.0
        %575 = vmatpush2.msra.mxu0 0.0
        %576 = vmatprep.subr.mxu0 0.0
        %577 = vmatpush2.msra.mxu0 0.0
        %578 = vmatprep.subr.mxu0 0.0
        %579 = vmatpush2.msra.mxu0 0.0
        %580 = vmatprep.subr.mxu0 0.0
        %581 = vmatpush2.msra.mxu0 0.0
        %582 = vmatprep.subr.mxu0 0.0
        %583 = vmatpush2.msra.mxu0 0.0
        %584 = vmatprep.mubr.f32.mxu0 0.0
        %585 = vmatmul.mubr.f32.gmra.mxu0 %v515
        %v586 = vpop.f32.mrf.mxu0
        %v587 = vadd.f32 0.0, %v586
        %v588 = vpop.f32.mrf.mxu0
        %589 = vmatprep.mubr.f32.mxu0 0.0
        %590 = vmatmul.mubr.f32.gmra.mxu0 %v518
        %v591 = vpop.f32.mrf.mxu0
        %v592 = vadd.f32 0.0, %v591
        %v593 = vpop.f32.mrf.mxu0
        %594 = vdwg.mxu0
        %v595 = vld [vmem:[%s6] sm:$0x1]
        %v597 = vlaneseq
        %v598 = vshrl.u32 %v597, 7
        %v599 = vsub.s32 0, %v598
        %v600 = vrot.slane %v595, %v599
        %v602 = vadd.f32 %v587, %v600
        %v603 = vadd.f32 %v592, %v600
        %vm604 = vcmask 56320
        %605 = vst.msk [vmem:[%s310] sm:$0xff] %vm604, %v602
        %606 = vst.msk [vmem:[%s310 + $0x8] sm:$0xff] %vm604, %v603
        %s607 = smul.u32 2, %s20
        %p608 = scmp.lt.s32.totalorder %s607, 5
        %s609 = scalar_select %p608, %s607, 5
        %s610 = smul.addr %s609, 8
        %s611 = scalar_lea.vmem %s7, %s610
        // Predicated region
        $region57: #{tpu_custom_call.1} parent=47 // pred_check
          %p612 = pneg %p190
        $region58: #{tpu_custom_call.1} parent=47 // pred_check_branch
          %614 = sbr.rel (%p612) target = $region60
        $region59: #{tpu_custom_call.1} parent=47 // pred_region
          %s615 = smul.u32 2, %s20
        $region60: #{tpu_custom_call.1} parent=47 // pred_fallthru
          _
      $region48: #{tpu_custom_call.1} parent=5 // pred_fallthru
        _
      %p616 = scmp.le.s32.totalorder 2, %s15
      // Predicated region
      $region61: #{tpu_custom_call.1} parent=5 // pred_check
        %p617 = pneg %p616
      $region62: #{tpu_custom_call.1} parent=5 // pred_check_branch
        %619 = sbr.rel (%p617) target = $region64
      $region63: #{tpu_custom_call.1} parent=5 // pred_region
        %s620 = ssub.s32 %s15, 2
        // Predicated region
        $region65: #{tpu_custom_call.1} parent=63 // pred_check
          %p621 = pneg %p196
        $region66: #{tpu_custom_call.1} parent=63 // pred_check_branch
          %623 = sbr.rel (%p621) target = $region68
        $region67: #{tpu_custom_call.1} parent=63 // pred_region
          %s624 = smul.u32 2, %s21
          %p625 = scmp.lt.s32.totalorder %s624, 5
          %s626 = scalar_select %p625, %s624, 5
          %s627 = smul.addr %s626, 8
          %s628 = scalar_lea.vmem %s7, %s627
        $region68: #{tpu_custom_call.1} parent=63 // pred_fallthru
          _
      $region64: #{tpu_custom_call.1} parent=5 // pred_fallthru
        _
    $region6: #{tpu_custom_call.1} parent=1 // loop_footer
      %s19 = sadd.s32 1, %s15
    $region7: #{tpu_custom_call.1} parent=1 // loop_footer_branch
      %14 = sbr.rel target = $region3
    $region8: #{tpu_custom_call.1} parent=1 // loop_exit
      _
    %629 = vsyncpa [#allocation3], 1
    %s630 = scalar_lea.sflag [#allocation3], 1
    %631 = vsyncpa %s630, 1
    %632 = vsyncpa [#allocation5], 1

</llo_original>
